<compile_context>
chip_gen: v5e
topology: v5e:2x2
jax: 0.10.0
libtpu: 0.0.40
codegen_flags: <defaults>
</compile_context>

<pallas_src>
import math

import jax
import jax.numpy as jnp
from jax.experimental import pallas as pl
from jax.experimental.pallas import tpu as pltpu


def _vmem_capacity_bytes():
    """Physical VMEM of the current chip; conservative fallback if unqueryable."""
    try:
        info = pltpu.get_tpu_info()
        return int(getattr(info, "vmem_capacity_bytes", 64 << 20))
    except Exception:
        return 64 << 20   # assume the smallest (v7x-like) budget


def _round_up8(n):
    return max(8, ((n + 7) // 8) * 8)


# ----------------------------------------------------------------------------
# AddBias: x (B, F) + bias (1, F)
# ----------------------------------------------------------------------------
def _add_bias_kernel(x_ref, b_ref, o_ref):
    # VPU broadcast-add: b_ref is (1, tf) and broadcasts over the batch rows.
    o_ref[...] = x_ref[...] + b_ref[...]


def add_bias(x, bias_param, *, alias_input=False):
    """AddBias.forward: x (B, F) + bias (1, F)."""
    B, F = x.shape
    assert bias_param.shape == (1, F)
    itemsize = x.dtype.itemsize

    # Fast path: at small sizes a fused XLA add beats any standalone pallas_call.
    if B * F * itemsize < (2 << 20):
        return x + bias_param

    vmem = _vmem_capacity_bytes()
    big_vmem = vmem >= (96 << 20)          # v5e / v6e (128 MiB); v7x has 64 MiB

    # Feature tile: full dim unless very large, then a 128-lane multiple so stores
    # stay unmasked (lane-dense).
    tf = F if F <= 4096 else 2048
    # Batch tile: bigger on 128-MiB-VMEM parts to amortize the ~0.35 us/step cost.
    tb = min(B, 1024 if big_vmem else 512)

    # Keep per-step VMEM (x + out, each double-buffered) under a per-generation budget.
    budget = (64 << 20) if big_vmem else (24 << 20)
    while tb > 8 and 4 * tb * tf * itemsize > budget:
        tb = _round_up8(tb // 2)

    # Megacore (v7x): make sure at least one "parallel" axis has >= 2 grid blocks.
    if pl.cdiv(B, tb) < 2 and pl.cdiv(F, tf) < 2 and B >= 16:
        tb = _round_up8(pl.cdiv(B, 2))

    n_b = pl.cdiv(B, tb)
    n_f = pl.cdiv(F, tf)

    cost = pl.CostEstimate(
        flops=B * F,
        transcendentals=0,
        bytes_accessed=2 * B * F * itemsize + F * itemsize,
    )
    return pl.pallas_call(
        _add_bias_kernel,
        out_shape=jax.ShapeDtypeStruct((B, F), x.dtype),
        # Feature axis outer so the (1, tf) bias tile is re-fetched only n_f times,
        # not n_f * n_b times.
        grid=(n_f, n_b),
        in_specs=[
            pl.BlockSpec((tb, tf), lambda j, i: (i, j)),
            pl.BlockSpec((1, tf), lambda j, i: (0, j)),
        ],
        out_specs=pl.BlockSpec((tb, tf), lambda j, i: (i, j)),
        compiler_params=pltpu.CompilerParams(
            dimension_semantics=("parallel", "parallel"),
            vmem_limit_bytes=(96 << 20) if big_vmem else (48 << 20),
        ),
        cost_estimate=cost,
        input_output_aliases={0: 0} if alias_input else {},
    )(x, bias_param)


# ----------------------------------------------------------------------------
# DiagGaussian.forward hot path:
#   std_row = exp(clamp(logstd + 0, min=-2.5))  -> (1, A)
# The AddBias input is always zeros and the std row is identical for every batch
# element, so this stays in plain JAX and XLA fuses the broadcast into consumers.
# ----------------------------------------------------------------------------
def diag_gaussian_std_row(logstd):
    return jnp.exp(jnp.maximum(logstd, -2.5))            # (1, A)


# ----------------------------------------------------------------------------
# Critic MLP: Linear(S,256)+ReLU, (Linear(256,256)+ReLU) x3, Linear(256,1)
# Fused into one kernel, tiled over batch (128 rows); the ~0.4 MB of bf16 weights
# stay resident in VMEM (index_map returns block (0,0) every step). The last
# Linear(256,1) is a VPU multiply + lane reduce instead of an N=1 MXU pass.
# ----------------------------------------------------------------------------
def _critic_kernel(x_ref, w1, b1, w2, b2, w3, b3, w4, b4, w5_row, b5, o_ref):
    h = x_ref[...]                                         # f32 (tb, S)
    for w, b in ((w1, b1), (w2, b2), (w3, b3), (w4, b4)):
        z = jnp.dot(h.astype(w.dtype), w[...],             # bf16 MXU, f32 accumulate
                    preferred_element_type=jnp.float32)
        h = jnp.maximum(z + b[...], 0.0)
    v = jnp.sum(h * w5_row[...], axis=-1, keepdims=True) + b5[...]
    o_ref[...] = v.astype(o_ref.dtype)


def critic_mlp(x, params, *, compute_dtype=jnp.bfloat16):
    """params: list of 5 (W, b) pairs; W_i: (d_in, d_out) f32, b_i: (1, d_out) f32."""
    B, S = x.shape
    hdim = params[0][0].shape[1]
    # 128-row tile: activations use half the vreg file, matches the MXU tile, and
    # gives >=2 grid blocks (v7x 2-TC sharding) from B >= 256.
    tb = B if B <= 128 else 128

    flat_args = []
    in_specs = [pl.BlockSpec((tb, S), lambda i: (i, 0))]
    for w, b in params[:-1]:
        wc = w.astype(compute_dtype)                       # bf16 weights, f32 biases
        flat_args += [wc, b]
        in_specs.append(pl.BlockSpec(wc.shape, lambda i: (0, 0)))
        in_specs.append(pl.BlockSpec(b.shape, lambda i: (0, 0)))
    w5, b5 = params[-1]                                    # (hdim, 1), (1, 1)
    w5_row = w5.reshape(1, hdim).astype(jnp.float32)       # f32 row for the VPU reduce
    flat_args += [w5_row, b5]
    in_specs.append(pl.BlockSpec((1, hdim), lambda i: (0, 0)))
    in_specs.append(pl.BlockSpec(b5.shape, lambda i: (0, 0)))

    n_param_bytes = sum(int(a.size) * a.dtype.itemsize for a in flat_args)
    cost = pl.CostEstimate(
        flops=2 * B * (S * hdim + 3 * hdim * hdim + hdim),
        transcendentals=0,
        bytes_accessed=4 * B * S + n_param_bytes + 4 * B,
    )
    return pl.pallas_call(
        _critic_kernel,
        out_shape=jax.ShapeDtypeStruct((B, 1), x.dtype),
        grid=(pl.cdiv(B, tb),),
        in_specs=in_specs,
        out_specs=pl.BlockSpec((tb, 1), lambda i: (i, 0)),
        compiler_params=pltpu.CompilerParams(dimension_semantics=("parallel",)),
        cost_estimate=cost,
    )(x, *flat_args)


# ----------------------------------------------------------------------------
# FixedNormal helpers (tiny elementwise + lane reductions — plain JAX, fused by XLA).
# `scale` may be the (1, A) std row; broadcasting against (B, A) is handled by XLA.
# ----------------------------------------------------------------------------
_HALF_LOG_2PI = 0.5 * math.log(2.0 * math.pi)


def normal_log_probs(loc, scale, actions):
    z = (actions - loc) / scale
    lp = -0.5 * z * z - jnp.log(scale) - _HALF_LOG_2PI
    return jnp.sum(lp, axis=-1, keepdims=True)


def normal_entropy(scale):
    ent = 0.5 + _HALF_LOG_2PI + jnp.log(scale)
    return jnp.sum(ent, axis=-1)


# ----------------------------------------------------------------------------
# Parameter init (matches init_r_: orthogonal weights, gain=sqrt(2), zero bias)
# ----------------------------------------------------------------------------
def orthogonal_init(key, shape, gain=1.0, dtype=jnp.float32):
    n_rows, n_cols = shape
    big, small = max(n_rows, n_cols), min(n_rows, n_cols)
    a = jax.random.normal(key, (big, small), dtype)
    q, r = jnp.linalg.qr(a)
    d = jnp.diagonal(r)
    q = q * jnp.where(d == 0, 1.0, jnp.sign(d))      # guard zero diagonal entries
    if n_rows < n_cols:
        q = q.T
    return gain * q


# ----------------------------------------------------------------------------
# Policy
# ----------------------------------------------------------------------------
class Policy:
    def __init__(self, key, state_dim, action_dim, actor_fn, h_size=256):
        self.actor = actor_fn                 # TODO(synk): external controller, not in spec
        self.state_dim = state_dim
        self.action_dim = action_dim
        keys = jax.random.split(key, 5)
        dims = [state_dim, h_size, h_size, h_size, h_size, 1]
        self.critic_params = []
        gain = math.sqrt(2.0)                 # nn.init.calculate_gain('relu')
        for i in range(5):
            w = orthogonal_init(keys[i], (dims[i], dims[i + 1]), gain=gain)
            b = jnp.zeros((1, dims[i + 1]), jnp.float32)
            self.critic_params.append((w, b))
        # DiagGaussian.logstd = AddBias(torch.zeros(action_dim)) -> (1, A) parameter
        self.logstd = jnp.zeros((1, action_dim), jnp.float32)

    def _dist(self, action_mean):
        # std row is identical across the batch; keep it (1, A) and let XLA broadcast.
        std_row = diag_gaussian_std_row(self.logstd)
        return action_mean, std_row

    def act(self, inputs, key=None, deterministic=False):
        action_mean = self.actor(inputs)
        mean, std = self._dist(action_mean)
        if deterministic:
            action = mean
        else:
            action = mean + std * jax.random.normal(key, mean.shape, mean.dtype)
        action_log_probs = normal_log_probs(mean, std, action)
        value = critic_mlp(inputs, self.critic_params)
        return value, action, action_log_probs

    def get_value(self, inputs):
        return critic_mlp(inputs, self.critic_params)

    def evaluate_actions(self, inputs, action):
        value = critic_mlp(inputs, self.critic_params)
        mode = self.actor(inputs)
        mean, std = self._dist(mode)
        action_log_probs = normal_log_probs(mean, std, action)
        # entropy is identical per batch element, so the mean over the (1,) row
        # equals the PyTorch mean over (B,) rows.
        dist_entropy = jnp.mean(normal_entropy(std))
        return value, action_log_probs, dist_entropy


# ----------------------------------------------------------------------------
if __name__ == "__main__":
    key = jax.random.PRNGKey(0)
    k_x, k_b, k_x2, k_b2, k_pol, k_in, k_wa, k_act, k_smp = jax.random.split(key, 9)

    # --- 1a. AddBias, tiny shape -> plain-JAX fast path ---
    B, F = 2, 32
    x = jax.random.normal(k_x, (B, F), jnp.float32)
    bias = jax.random.normal(k_b, (F,), jnp.float32)
    bias_param = bias[None, :]                      # AddBias._bias = bias.unsqueeze(0)
    out = jax.block_until_ready(add_bias(x, bias_param))
    assert out.shape == (B, F)
    assert jnp.allclose(out, x + bias_param, atol=1e-6, rtol=1e-6)

    # --- 1b. AddBias, larger shape -> tiled Pallas kernel (multi-block grid) ---
    B2, F2 = 1024, 512
    x2 = jax.random.normal(k_x2, (B2, F2), jnp.float32)
    bias2 = jax.random.normal(k_b2, (1, F2), jnp.float32)
    out2 = jax.block_until_ready(add_bias(x2, bias2))
    assert out2.shape == (B2, F2)
    assert jnp.allclose(out2, x2 + bias2, atol=1e-6, rtol=1e-6)

    # --- 2. Full Policy forward passes ---
    state_dim, action_dim, h_size = 32, 8, 256
    # TODO(synk): the actor `controller` is external to this module; linear stand-in.
    Wa = 0.1 * jax.random.normal(k_wa, (state_dim, action_dim), jnp.float32)
    actor_fn = lambda s: s @ Wa

    policy = Policy(k_pol, state_dim, action_dim, actor_fn, h_size)
    inputs = jax.random.normal(k_in, (B, state_dim), jnp.float32)

    value, action, logp = policy.act(inputs, deterministic=True)
    value, action, logp = jax.block_until_ready((value, action, logp))
    assert value.shape == (B, 1)
    assert action.shape == (B, action_dim)
    assert logp.shape == (B, 1)

    # Reference critic (plain JAX, highest precision) vs fused Pallas MLP kernel
    # (bf16 weights / f32 accumulation inside the kernel).
    def ref_critic(s):
        h = s
        for w, b in policy.critic_params[:-1]:
            h = jnp.maximum(jnp.dot(h, w, precision=jax.lax.Precision.HIGHEST) + b, 0.0)
        w, b = policy.critic_params[-1]
        return jnp.dot(h, w, precision=jax.lax.Precision.HIGHEST) + b

    assert jnp.allclose(value, ref_critic(inputs), atol=5e-2, rtol=5e-2)

    # Reference std (row) vs the plain-JAX DiagGaussian path.
    ref_std_row = jnp.exp(jnp.maximum(policy.logstd, -2.5))
    _, std_row = policy._dist(actor_fn(inputs))
    assert std_row.shape == (1, action_dim)
    assert jnp.allclose(std_row, ref_std_row, atol=1e-6, rtol=1e-6)

    # evaluate_actions with an arbitrary action.
    rand_action = jax.random.normal(k_act, (B, action_dim), jnp.float32)
    v2, lp2, ent = jax.block_until_ready(
        policy.evaluate_actions(inputs, rand_action))
    assert v2.shape == (B, 1) and lp2.shape == (B, 1) and ent.shape == ()

    # Reference log_probs / entropy check against a full-broadcast formulation.
    mean_ref = actor_fn(inputs)
    std_full = jnp.broadcast_to(ref_std_row, (B, action_dim))
    z = (rand_action - mean_ref) / std_full
    lp_ref = jnp.sum(-0.5 * z * z - jnp.log(std_full) - _HALF_LOG_2PI,
                     axis=-1, keepdims=True)
    ent_ref = jnp.mean(jnp.sum(0.5 + _HALF_LOG_2PI + jnp.log(std_full), axis=-1))
    assert jnp.allclose(lp2, lp_ref, atol=1e-5, rtol=1e-5)
    assert jnp.allclose(ent, ent_ref, atol=1e-5, rtol=1e-5)

    # Stochastic act path (exercises sampling + log_probs).
    v3, a3, lp3 = jax.block_until_ready(
        policy.act(inputs, key=k_smp, deterministic=False))
    assert a3.shape == (B, action_dim) and lp3.shape == (B, 1)

    # get_value at a batch large enough to hit the multi-block critic grid.
    big_inputs = jax.random.normal(k_in, (512, state_dim), jnp.float32)
    vbig = jax.block_until_ready(policy.get_value(big_inputs))
    assert vbig.shape == (512, 1)
    assert jnp.allclose(vbig, ref_critic(big_inputs), atol=5e-2, rtol=5e-2)

    print("KERNEL_OK")
</pallas_src>

<mosaic_0001>
module attributes {stable_mosaic.version = 11 : i64} {
  func.func @_add_bias_kernel(%arg0: i32, %arg1: i32, %arg2: memref<512x512xf32, #tpu.memory_space<vmem>>, %arg3: memref<1x512xf32, #tpu.memory_space<vmem>>, %arg4: memref<512x512xf32, #tpu.memory_space<vmem>>) attributes {dimension_semantics = [#tpu.dimension_semantics<parallel>, #tpu.dimension_semantics<parallel>], iteration_bounds = array<i64: 1, 2>, scalar_prefetch = 0 : i64, scratch_operands = 0 : i64, tpu.core_type = #tpu.core_type<tc>, window_params = [{transform_indices = @transform_0, window_bounds = array<i64: 512, 512>}, {transform_indices = @transform_1, window_bounds = array<i64: 1, 512>}, {transform_indices = @transform_2, window_bounds = array<i64: 512, 512>}]} {
    %c0 = arith.constant 0 : index
    %c0_0 = arith.constant 0 : index
    %0 = vector.load %arg2[%c0, %c0_0] : memref<512x512xf32, #tpu.memory_space<vmem>>, vector<512x512xf32>
    %c0_1 = arith.constant 0 : index
    %c0_2 = arith.constant 0 : index
    %1 = vector.load %arg3[%c0_1, %c0_2] : memref<1x512xf32, #tpu.memory_space<vmem>>, vector<1x512xf32>
    %2 = vector.broadcast %1 : vector<1x512xf32> to vector<512x512xf32>
    %3 = arith.addf %0, %2 : vector<512x512xf32>
    %c0_3 = arith.constant 0 : index
    %c0_4 = arith.constant 0 : index
    %4 = vector.load %arg4[%c0_3, %c0_4] : memref<512x512xf32, #tpu.memory_space<vmem>>, vector<512x512xf32>
    tpu.vector_store %arg4[%c0_3, %c0_4], %3 {strides = array<i32>} : memref<512x512xf32, #tpu.memory_space<vmem>>, vector<512x512xf32>,
    return
  }
  func.func @transform_0(%arg0: i32, %arg1: i32) -> (i32, i32) {
    %c0_i32 = arith.constant 0 : i32
    return %arg1, %arg0 : i32, i32
  }
  func.func @transform_1(%arg0: i32, %arg1: i32) -> (i32, i32) {
    %c0_i32 = arith.constant 0 : i32
    %c0_i32_0 = arith.constant 0 : i32
    return %c0_i32, %arg0 : i32, i32
  }
  func.func @transform_2(%arg0: i32, %arg1: i32) -> (i32, i32) {
    %c0_i32 = arith.constant 0 : i32
    return %arg1, %arg0 : i32, i32
  }
}

</mosaic_0001>

<llo_original>
// kernel: tpu_custom_call.1
$region0: #{tpu_custom_call.1}
  #allocation0 [shape = 'u32[]', space=smem, size = 0x4, offset = 0x4, fixed_abs, tag = 'smem constant byte address 0x4 - core index']
  #allocation1 [shape = 'u32[72,128]{1,0:T(1,128)}', space=vmem, size = 0x9000, scoped, tag = 'internal scratch']
  %s0 = inlined_call_operand.hbm [shape: f32[1024,512], index: 0, kind: input, shape index: {}]
  %s1 = inlined_call_operand.hbm [shape: f32[1,512], index: 1, kind: input, shape index: {}]
  %s2 = inlined_call_operand.hbm [shape: f32[1024,512], index: 2, kind: output, shape index: {}]
  %s3 = sld [smem:[#allocation0]]
  $region49: #{tpu_custom_call.1} parent=0
    _
  %s5 = ssub.s32 1, %s3
  %s6 = scalar_select 0, %s5, %s3
  $region1: #{tpu_custom_call.1} parent=0
    #allocation2 [shape = 'u8[2097152]{0}', space=vmem, size = 0x200000, scoped, tag = 'input window, operand 0']
    #allocation3 [shape = 's32[2]{0}', space=sflag, size = 0x8, scoped, tag = 'scoped memory for tpu_custom_call.1']
    #allocation4 [shape = 's32[2]{0}', space=sflag, size = 0x8, scoped, tag = 'scoped memory for tpu_custom_call.1']
    #allocation5 [shape = 'u8[2048]{0}', space=vmem, size = 0x800, scoped, tag = 'input window, operand 1, single buffered']
    #allocation6 [shape = 's32[1]{0}', space=sflag, size = 0x4, scoped, tag = 'scoped memory for tpu_custom_call.1']
    #allocation7 [shape = 'u8[2097152]{0}', space=vmem, size = 0x200000, scoped, tag = 'output window, operand 0']
    %7 = vsyncpa [#allocation3], 0
    %s8 = scalar_lea.sflag [#allocation3], 1
    %9 = vsyncpa %s8, 0
    %10 = vsyncpa [#allocation6], 0
    %11 = vsyncpa [#allocation4], 0
    %s12 = scalar_lea.sflag [#allocation4], 1
    %13 = vsyncpa %s12, 0
    loop: start=0, step=1, limit=4
    $region2: #{tpu_custom_call.1} parent=1 // loop_pre_header
      _
    $region3: #{tpu_custom_call.1} parent=1 // loop_header
      %s15 = sphi 0, %s19
      %p16 = scmp.ge.s32.totalorder %s15, 4
      %s22 = sphi 0, %s34
      %s23 = sphi 0, %s30
      %s24 = sphi 0, %s22
      %s25 = sphi 0, %s23
      %s26 = sphi 0, %s24
      %s27 = sphi 0, %s25
      %s39 = sphi 0, %s41
      %s42 = sphi 0, %s39
      %s43 = sphi 0, %s42
      %s59 = sphi 0, %s43
      %s65 = sphi 0, %s67
      %s68 = sphi 0, %s65
      %s69 = sphi 0, %s68
      %s85 = sphi 0, %s69
      %s93 = sphi 0, %s95
      %s96 = sphi 0, %s93
      %s97 = sphi 0, %s96
      %s113 = sphi 0, %s97
    $region4: #{tpu_custom_call.1} parent=1 // loop_header_branch
      %18 = sbr.rel (%p16) target = $region8
    $region5: #{tpu_custom_call.1} parent=1 // loop_body
      %s20 = ssub.s32 %s15, 1
      %s21 = ssub.s32 %s15, 2
      %s28 = sadd.s32 1, %s23
      %p29 = scmp.ge.s32.totalorder %s28, 2
      %s30 = scalar_select %p29, 0, %s28
      %s31 = sadd.s32 1, %s22
      %s32 = scalar_select %p29, %s31, %s22
      %p33 = scmp.ge.s32.totalorder %s32, 1
      %s34 = scalar_select %p33, 0, %s32
      %s35 = ssub.s32 %s23, %s30
      %s36 = ssub.s32 %s22, %s34
      %s37 = sor.u32 %s35, %s36
      %p38 = scmp.eq.s32.totalorder %s37, 0
      %s40 = sadd.s32 %s39, 1
      %s41 = scalar_select %p38, %s39, %s40
      %p44 = pneg %p38
      %p45 = scmp.eq.s32.totalorder %s15, 1
      %p46 = por %p44, %p45
      %p47 = scmp.ne.s32.totalorder %s39, %s42
      %p48 = scmp.eq.s32.totalorder %s15, 0
      %p49 = por %p47, %p48
      %p50 = scmp.ne.s32.totalorder %s39, %s42
      %p51 = scmp.eq.s32.totalorder %s20, 1
      %p52 = por %p50, %p51
      %p53 = scmp.ne.s32.totalorder %s42, %s43
      %p54 = scmp.eq.s32.totalorder %s20, 0
      %p55 = por %p53, %p54
      %p56 = scmp.ne.s32.totalorder %s42, %s43
      %p57 = scmp.eq.s32.totalorder %s21, 1
      %p58 = por %p56, %p57
      %p60 = scmp.ne.s32.totalorder %s43, %s59
      %p61 = scmp.eq.s32.totalorder %s21, 0
      %p62 = por %p60, %p61
      %s63 = ssub.s32 %s22, %s34
      %p64 = scmp.eq.s32.totalorder %s63, 0
      %s66 = sadd.s32 %s65, 1
      %s67 = scalar_select %p64, %s65, %s66
      %p70 = pneg %p64
      %p71 = scmp.eq.s32.totalorder %s15, 1
      %p72 = por %p70, %p71
      %p73 = scmp.ne.s32.totalorder %s65, %s68
      %p74 = scmp.eq.s32.totalorder %s15, 0
      %p75 = por %p73, %p74
      %p76 = scmp.ne.s32.totalorder %s65, %s68
      %p77 = scmp.eq.s32.totalorder %s20, 1
      %p78 = por %p76, %p77
      %p79 = scmp.ne.s32.totalorder %s68, %s69
      %p80 = scmp.eq.s32.totalorder %s20, 0
      %p81 = por %p79, %p80
      %p82 = scmp.ne.s32.totalorder %s68, %s69
      %p83 = scmp.eq.s32.totalorder %s21, 1
      %p84 = por %p82, %p83
      %p86 = scmp.ne.s32.totalorder %s69, %s85
      %p87 = scmp.eq.s32.totalorder %s21, 0
      %p88 = por %p86, %p87
      %s89 = ssub.s32 %s23, %s30
      %s90 = ssub.s32 %s22, %s34
      %s91 = sor.u32 %s89, %s90
      %p92 = scmp.eq.s32.totalorder %s91, 0
      %s94 = sadd.s32 %s93, 1
      %s95 = scalar_select %p92, %s93, %s94
      %p98 = pneg %p92
      %p99 = scmp.eq.s32.totalorder %s15, 1
      %p100 = por %p98, %p99
      %p101 = scmp.ne.s32.totalorder %s93, %s96
      %p102 = scmp.eq.s32.totalorder %s15, 0
      %p103 = por %p101, %p102
      %p104 = scmp.ne.s32.totalorder %s93, %s96
      %p105 = scmp.eq.s32.totalorder %s20, 1
      %p106 = por %p104, %p105
      %p107 = scmp.ne.s32.totalorder %s96, %s97
      %p108 = scmp.eq.s32.totalorder %s20, 0
      %p109 = por %p107, %p108
      %p110 = scmp.ne.s32.totalorder %s96, %s97
      %p111 = scmp.eq.s32.totalorder %s21, 1
      %p112 = por %p110, %p111
      %p114 = scmp.ne.s32.totalorder %s97, %s113
      %p115 = scmp.eq.s32.totalorder %s21, 0
      %p116 = por %p114, %p115
      %p117 = scmp.le.s32.totalorder 1, %s15
      %p118 = scmp.lt.s32.totalorder %s15, 3
      %p119 = pnand %p117, %p118
      %p120 = pneg %p119
      // Predicated region
      $region9: #{tpu_custom_call.1} parent=5 // pred_check
        _
      $region10: #{tpu_custom_call.1} parent=5 // pred_check_branch
        %122 = sbr.rel (%p119) target = $region12
      $region11: #{tpu_custom_call.1} parent=5 // pred_region
        %s123 = ssub.s32 %s15, 1
        // Predicated region
        $region13: #{tpu_custom_call.1} parent=11 // pred_check
          %p124 = pneg %p81
        $region14: #{tpu_custom_call.1} parent=11 // pred_check_branch
          %126 = sbr.rel (%p124) target = $region16
        $region15: #{tpu_custom_call.1} parent=11 // pred_region
          %s127 = smul.u32 4, %s24
          %129 = vsyncadd [#allocation6], 0
          %s130 = scalar_lea.hbm %s1, %s127
          %s132 = sshll.u32 %s130, 4
          %s133 = int_to_ptr.hbm [resolvable:$true] %s132
          %s134 = sshll.u32 [#allocation5], 4
          %s135 = int_to_ptr.vmem [resolvable:$true] %s134
          %137 = dma.hbm_to_vmem [thread:$0]  %s133, 64, %s135, [#allocation6]
        $region16: #{tpu_custom_call.1} parent=11 // pred_fallthru
          _
      $region12: #{tpu_custom_call.1} parent=5 // pred_fallthru
        _
      %p138 = scmp.lt.s32.totalorder %s15, 2
      // Predicated region
      $region17: #{tpu_custom_call.1} parent=5 // pred_check
        %p139 = pneg %p138
      $region18: #{tpu_custom_call.1} parent=5 // pred_check_branch
        %141 = sbr.rel (%p139) target = $region20
      $region19: #{tpu_custom_call.1} parent=5 // pred_region
        // Predicated region
        $region21: #{tpu_custom_call.1} parent=19 // pred_check
          %p142 = pneg %p49
        $region22: #{tpu_custom_call.1} parent=19 // pred_check_branch
          %144 = sbr.rel (%p142) target = $region24
        $region23: #{tpu_custom_call.1} parent=19 // pred_region
          %s145 = sand.u32 %s39, 1
          %s146 = scalar_lea.sflag [#allocation3], %s145
          %s147 = sand.u32 %s39, 1
          %s148 = smul.addr %s147, 2048
          %s149 = scalar_lea.vmem [#allocation2], %s148
          %s150 = smul.u32 64, %s23
          %s151 = smul.u32 4, %s22
          %153 = vsyncadd %s146, 0
          %s154 = smul.addr %s150, 4
          %s155 = sadd.s32 %s151, %s154
          %s156 = smul.addr %s155, 8
          %s157 = scalar_lea.hbm %s0, %s156
          %s158 = sshll.u32 %s157, 4
          %s159 = int_to_ptr.hbm [resolvable:$true] %s158
          %s160 = sshll.u32 %s149, 4
          %s161 = int_to_ptr.vmem [resolvable:$true] %s160
          %166 = dma.hbm_to_vmem [thread:$0]  %s159, 32768, %s161, %s146, 512, 512, 32
        $region24: #{tpu_custom_call.1} parent=19 // pred_fallthru
          _
      $region20: #{tpu_custom_call.1} parent=5 // pred_fallthru
        _
      %p167 = scmp.le.s32.totalorder 1, %s15
      %p168 = scmp.lt.s32.totalorder %s15, 3
      %p169 = pnand %p167, %p168
      %p170 = pneg %p169
      // Predicated region
      $region25: #{tpu_custom_call.1} parent=5 // pred_check
        _
      $region26: #{tpu_custom_call.1} parent=5 // pred_check_branch
        %172 = sbr.rel (%p169) target = $region28
      $region27: #{tpu_custom_call.1} parent=5 // pred_region
        %s173 = ssub.s32 %s15, 1
        %s174 = sand.u32 %s42, 1
        %s175 = scalar_lea.sflag [#allocation3], %s174
        %s176 = sand.u32 %s42, 1
        %s177 = smul.addr %s176, 2048
        %s178 = scalar_lea.vmem [#allocation2], %s177
        // Predicated region
        $region29: #{tpu_custom_call.1} parent=27 // pred_check
          %p179 = pneg %p55
        $region30: #{tpu_custom_call.1} parent=27 // pred_check_branch
          %181 = sbr.rel (%p179) target = $region32
        $region31: #{tpu_custom_call.1} parent=27 // pred_region
          %183 = dma.done %s175, 32768
        $region32: #{tpu_custom_call.1} parent=27 // pred_fallthru
          _
        // Predicated region
        $region33: #{tpu_custom_call.1} parent=27 // pred_check
          %p184 = pneg %p81
        $region34: #{tpu_custom_call.1} parent=27 // pred_check_branch
          %186 = sbr.rel (%p184) target = $region36
        $region35: #{tpu_custom_call.1} parent=27 // pred_region
          %188 = dma.done [#allocation6], 64
        $region36: #{tpu_custom_call.1} parent=27 // pred_fallthru
          _
        %s189 = sand.u32 %s42, 1
        %s190 = scalar_lea.sflag [#allocation3], %s189
        %s191 = sand.u32 %s42, 1
        %s192 = smul.addr %s191, 2048
        %s193 = scalar_lea.vmem [#allocation2], %s192
        %p194 = pneg %p55
        %p195 = pneg %p52
        %p196 = pneg %p81
        %p197 = pneg %p78
        %p198 = pneg %p109
        %p199 = pneg %p106
        %s200 = sand.u32 %s96, 1
        %s201 = scalar_lea.sflag [#allocation4], %s200
        %s202 = sand.u32 %s96, 1
        %s203 = smul.addr %s202, 2048
        %s204 = scalar_lea.vmem [#allocation7], %s203
        %s205 = smul.u32 64, %s25
        %s206 = smul.u32 4, %s24
        %s207 = smul.u32 4, %s24
        %s208 = smul.u32 64, %s25
        %s209 = smul.u32 4, %s24
        %v210 = vld [vmem:[%s178] sm:$0xff]
        %v211 = vld [vmem:[%s178 + $0x8] sm:$0xff]
        %v212 = vld [vmem:[%s178 + $0x10] sm:$0xff]
        %v213 = vld [vmem:[%s178 + $0x18] sm:$0xff]
        %v214 = vld [vmem:[%s178 + $0x20] sm:$0xff]
        %v215 = vld [vmem:[%s178 + $0x28] sm:$0xff]
        %v216 = vld [vmem:[%s178 + $0x30] sm:$0xff]
        %v217 = vld [vmem:[%s178 + $0x38] sm:$0xff]
        %v218 = vld [vmem:[%s178 + $0x40] sm:$0xff]
        %v219 = vld [vmem:[%s178 + $0x48] sm:$0xff]
        %v220 = vld [vmem:[%s178 + $0x50] sm:$0xff]
        %v221 = vld [vmem:[%s178 + $0x58] sm:$0xff]
        %v222 = vld [vmem:[%s178 + $0x60] sm:$0xff]
        %v223 = vld [vmem:[%s178 + $0x68] sm:$0xff]
        %v224 = vld [vmem:[%s178 + $0x70] sm:$0xff]
        %v225 = vld [vmem:[%s178 + $0x78] sm:$0xff]
        %v226 = vld [vmem:[%s178 + $0x80] sm:$0xff]
        %v227 = vld [vmem:[%s178 + $0x88] sm:$0xff]
        %v228 = vld [vmem:[%s178 + $0x90] sm:$0xff]
        %v229 = vld [vmem:[%s178 + $0x98] sm:$0xff]
        %v230 = vld [vmem:[%s178 + $0xa0] sm:$0xff]
        %v231 = vld [vmem:[%s178 + $0xa8] sm:$0xff]
        %v232 = vld [vmem:[%s178 + $0xb0] sm:$0xff]
        %v233 = vld [vmem:[%s178 + $0xb8] sm:$0xff]
        %v234 = vld [vmem:[%s178 + $0xc0] sm:$0xff]
        %v235 = vld [vmem:[%s178 + $0xc8] sm:$0xff]
        %v236 = vld [vmem:[%s178 + $0xd0] sm:$0xff]
        %v237 = vld [vmem:[%s178 + $0xd8] sm:$0xff]
        %v238 = vld [vmem:[%s178 + $0xe0] sm:$0xff]
        %v239 = vld [vmem:[%s178 + $0xe8] sm:$0xff]
        %v240 = vld [vmem:[%s178 + $0xf0] sm:$0xff]
        %v241 = vld [vmem:[%s178 + $0xf8] sm:$0xff]
        %v242 = vld [vmem:[%s178 + $0x100] sm:$0xff]
        %v243 = vld [vmem:[%s178 + $0x108] sm:$0xff]
        %v244 = vld [vmem:[%s178 + $0x110] sm:$0xff]
        %v245 = vld [vmem:[%s178 + $0x118] sm:$0xff]
        %v246 = vld [vmem:[%s178 + $0x120] sm:$0xff]
        %v247 = vld [vmem:[%s178 + $0x128] sm:$0xff]
        %v248 = vld [vmem:[%s178 + $0x130] sm:$0xff]
        %v249 = vld [vmem:[%s178 + $0x138] sm:$0xff]
        %v250 = vld [vmem:[%s178 + $0x140] sm:$0xff]
        %v251 = vld [vmem:[%s178 + $0x148] sm:$0xff]
        %v252 = vld [vmem:[%s178 + $0x150] sm:$0xff]
        %v253 = vld [vmem:[%s178 + $0x158] sm:$0xff]
        %v254 = vld [vmem:[%s178 + $0x160] sm:$0xff]
        %v255 = vld [vmem:[%s178 + $0x168] sm:$0xff]
        %v256 = vld [vmem:[%s178 + $0x170] sm:$0xff]
        %v257 = vld [vmem:[%s178 + $0x178] sm:$0xff]
        %v258 = vld [vmem:[%s178 + $0x180] sm:$0xff]
        %v259 = vld [vmem:[%s178 + $0x188] sm:$0xff]
        %v260 = vld [vmem:[%s178 + $0x190] sm:$0xff]
        %v261 = vld [vmem:[%s178 + $0x198] sm:$0xff]
        %v262 = vld [vmem:[%s178 + $0x1a0] sm:$0xff]
        %v263 = vld [vmem:[%s178 + $0x1a8] sm:$0xff]
        %v264 = vld [vmem:[%s178 + $0x1b0] sm:$0xff]
        %v265 = vld [vmem:[%s178 + $0x1b8] sm:$0xff]
        %v266 = vld [vmem:[%s178 + $0x1c0] sm:$0xff]
        %v267 = vld [vmem:[%s178 + $0x1c8] sm:$0xff]
        %v268 = vld [vmem:[%s178 + $0x1d0] sm:$0xff]
        %v269 = vld [vmem:[%s178 + $0x1d8] sm:$0xff]
        %v270 = vld [vmem:[%s178 + $0x1e0] sm:$0xff]
        %v271 = vld [vmem:[%s178 + $0x1e8] sm:$0xff]
        %v272 = vld [vmem:[%s178 + $0x1f0] sm:$0xff]
        %v273 = vld [vmem:[%s178 + $0x1f8] sm:$0xff]
        %v274 = vld [vmem:[%s178 + $0x200] sm:$0xff]
        %v275 = vld [vmem:[%s178 + $0x208] sm:$0xff]
        %v276 = vld [vmem:[%s178 + $0x210] sm:$0xff]
        %v277 = vld [vmem:[%s178 + $0x218] sm:$0xff]
        %v278 = vld [vmem:[%s178 + $0x220] sm:$0xff]
        %v279 = vld [vmem:[%s178 + $0x228] sm:$0xff]
        %v280 = vld [vmem:[%s178 + $0x230] sm:$0xff]
        %v281 = vld [vmem:[%s178 + $0x238] sm:$0xff]
        %v282 = vld [vmem:[%s178 + $0x240] sm:$0xff]
        %v283 = vld [vmem:[%s178 + $0x248] sm:$0xff]
        %v284 = vld [vmem:[%s178 + $0x250] sm:$0xff]
        %v285 = vld [vmem:[%s178 + $0x258] sm:$0xff]
        %v286 = vld [vmem:[%s178 + $0x260] sm:$0xff]
        %v287 = vld [vmem:[%s178 + $0x268] sm:$0xff]
        %v288 = vld [vmem:[%s178 + $0x270] sm:$0xff]
        %v289 = vld [vmem:[%s178 + $0x278] sm:$0xff]
        %v290 = vld [vmem:[%s178 + $0x280] sm:$0xff]
        %v291 = vld [vmem:[%s178 + $0x288] sm:$0xff]
        %v292 = vld [vmem:[%s178 + $0x290] sm:$0xff]
        %v293 = vld [vmem:[%s178 + $0x298] sm:$0xff]
        %v294 = vld [vmem:[%s178 + $0x2a0] sm:$0xff]
        %v295 = vld [vmem:[%s178 + $0x2a8] sm:$0xff]
        %v296 = vld [vmem:[%s178 + $0x2b0] sm:$0xff]
        %v297 = vld [vmem:[%s178 + $0x2b8] sm:$0xff]
        %v298 = vld [vmem:[%s178 + $0x2c0] sm:$0xff]
        %v299 = vld [vmem:[%s178 + $0x2c8] sm:$0xff]
        %v300 = vld [vmem:[%s178 + $0x2d0] sm:$0xff]
        %v301 = vld [vmem:[%s178 + $0x2d8] sm:$0xff]
        %v302 = vld [vmem:[%s178 + $0x2e0] sm:$0xff]
        %v303 = vld [vmem:[%s178 + $0x2e8] sm:$0xff]
        %v304 = vld [vmem:[%s178 + $0x2f0] sm:$0xff]
        %v305 = vld [vmem:[%s178 + $0x2f8] sm:$0xff]
        %v306 = vld [vmem:[%s178 + $0x300] sm:$0xff]
        %v307 = vld [vmem:[%s178 + $0x308] sm:$0xff]
        %v308 = vld [vmem:[%s178 + $0x310] sm:$0xff]
        %v309 = vld [vmem:[%s178 + $0x318] sm:$0xff]
        %v310 = vld [vmem:[%s178 + $0x320] sm:$0xff]
        %v311 = vld [vmem:[%s178 + $0x328] sm:$0xff]
        %v312 = vld [vmem:[%s178 + $0x330] sm:$0xff]
        %v313 = vld [vmem:[%s178 + $0x338] sm:$0xff]
        %v314 = vld [vmem:[%s178 + $0x340] sm:$0xff]
        %v315 = vld [vmem:[%s178 + $0x348] sm:$0xff]
        %v316 = vld [vmem:[%s178 + $0x350] sm:$0xff]
        %v317 = vld [vmem:[%s178 + $0x358] sm:$0xff]
        %v318 = vld [vmem:[%s178 + $0x360] sm:$0xff]
        %v319 = vld [vmem:[%s178 + $0x368] sm:$0xff]
        %v320 = vld [vmem:[%s178 + $0x370] sm:$0xff]
        %v321 = vld [vmem:[%s178 + $0x378] sm:$0xff]
        %v322 = vld [vmem:[%s178 + $0x380] sm:$0xff]
        %v323 = vld [vmem:[%s178 + $0x388] sm:$0xff]
        %v324 = vld [vmem:[%s178 + $0x390] sm:$0xff]
        %v325 = vld [vmem:[%s178 + $0x398] sm:$0xff]
        %v326 = vld [vmem:[%s178 + $0x3a0] sm:$0xff]
        %v327 = vld [vmem:[%s178 + $0x3a8] sm:$0xff]
        %v328 = vld [vmem:[%s178 + $0x3b0] sm:$0xff]
        %v329 = vld [vmem:[%s178 + $0x3b8] sm:$0xff]
        %v330 = vld [vmem:[%s178 + $0x3c0] sm:$0xff]
        %v331 = vld [vmem:[%s178 + $0x3c8] sm:$0xff]
        %v332 = vld [vmem:[%s178 + $0x3d0] sm:$0xff]
        %v333 = vld [vmem:[%s178 + $0x3d8] sm:$0xff]
        %v334 = vld [vmem:[%s178 + $0x3e0] sm:$0xff]
        %v335 = vld [vmem:[%s178 + $0x3e8] sm:$0xff]
        %v336 = vld [vmem:[%s178 + $0x3f0] sm:$0xff]
        %v337 = vld [vmem:[%s178 + $0x3f8] sm:$0xff]
        %v338 = vld [vmem:[%s178 + $0x400] sm:$0xff]
        %v339 = vld [vmem:[%s178 + $0x408] sm:$0xff]
        %v340 = vld [vmem:[%s178 + $0x410] sm:$0xff]
        %v341 = vld [vmem:[%s178 + $0x418] sm:$0xff]
        %v342 = vld [vmem:[%s178 + $0x420] sm:$0xff]
        %v343 = vld [vmem:[%s178 + $0x428] sm:$0xff]
        %v344 = vld [vmem:[%s178 + $0x430] sm:$0xff]
        %v345 = vld [vmem:[%s178 + $0x438] sm:$0xff]
        %v346 = vld [vmem:[%s178 + $0x440] sm:$0xff]
        %v347 = vld [vmem:[%s178 + $0x448] sm:$0xff]
        %v348 = vld [vmem:[%s178 + $0x450] sm:$0xff]
        %v349 = vld [vmem:[%s178 + $0x458] sm:$0xff]
        %v350 = vld [vmem:[%s178 + $0x460] sm:$0xff]
        %v351 = vld [vmem:[%s178 + $0x468] sm:$0xff]
        %v352 = vld [vmem:[%s178 + $0x470] sm:$0xff]
        %v353 = vld [vmem:[%s178 + $0x478] sm:$0xff]
        %v354 = vld [vmem:[%s178 + $0x480] sm:$0xff]
        %v355 = vld [vmem:[%s178 + $0x488] sm:$0xff]
        %v356 = vld [vmem:[%s178 + $0x490] sm:$0xff]
        %v357 = vld [vmem:[%s178 + $0x498] sm:$0xff]
        %v358 = vld [vmem:[%s178 + $0x4a0] sm:$0xff]
        %v359 = vld [vmem:[%s178 + $0x4a8] sm:$0xff]
        %v360 = vld [vmem:[%s178 + $0x4b0] sm:$0xff]
        %v361 = vld [vmem:[%s178 + $0x4b8] sm:$0xff]
        %v362 = vld [vmem:[%s178 + $0x4c0] sm:$0xff]
        %v363 = vld [vmem:[%s178 + $0x4c8] sm:$0xff]
        %v364 = vld [vmem:[%s178 + $0x4d0] sm:$0xff]
        %v365 = vld [vmem:[%s178 + $0x4d8] sm:$0xff]
        %v366 = vld [vmem:[%s178 + $0x4e0] sm:$0xff]
        %v367 = vld [vmem:[%s178 + $0x4e8] sm:$0xff]
        %v368 = vld [vmem:[%s178 + $0x4f0] sm:$0xff]
        %v369 = vld [vmem:[%s178 + $0x4f8] sm:$0xff]
        %v370 = vld [vmem:[%s178 + $0x500] sm:$0xff]
        %v371 = vld [vmem:[%s178 + $0x508] sm:$0xff]
        %v372 = vld [vmem:[%s178 + $0x510] sm:$0xff]
        %v373 = vld [vmem:[%s178 + $0x518] sm:$0xff]
        %v374 = vld [vmem:[%s178 + $0x520] sm:$0xff]
        %v375 = vld [vmem:[%s178 + $0x528] sm:$0xff]
        %v376 = vld [vmem:[%s178 + $0x530] sm:$0xff]
        %v377 = vld [vmem:[%s178 + $0x538] sm:$0xff]
        %v378 = vld [vmem:[%s178 + $0x540] sm:$0xff]
        %v379 = vld [vmem:[%s178 + $0x548] sm:$0xff]
        %v380 = vld [vmem:[%s178 + $0x550] sm:$0xff]
        %v381 = vld [vmem:[%s178 + $0x558] sm:$0xff]
        %v382 = vld [vmem:[%s178 + $0x560] sm:$0xff]
        %v383 = vld [vmem:[%s178 + $0x568] sm:$0xff]
        %v384 = vld [vmem:[%s178 + $0x570] sm:$0xff]
        %v385 = vld [vmem:[%s178 + $0x578] sm:$0xff]
        %v386 = vld [vmem:[%s178 + $0x580] sm:$0xff]
        %v387 = vld [vmem:[%s178 + $0x588] sm:$0xff]
        %v388 = vld [vmem:[%s178 + $0x590] sm:$0xff]
        %v389 = vld [vmem:[%s178 + $0x598] sm:$0xff]
        %v390 = vld [vmem:[%s178 + $0x5a0] sm:$0xff]
        %v391 = vld [vmem:[%s178 + $0x5a8] sm:$0xff]
        %v392 = vld [vmem:[%s178 + $0x5b0] sm:$0xff]
        %v393 = vld [vmem:[%s178 + $0x5b8] sm:$0xff]
        %v394 = vld [vmem:[%s178 + $0x5c0] sm:$0xff]
        %v395 = vld [vmem:[%s178 + $0x5c8] sm:$0xff]
        %v396 = vld [vmem:[%s178 + $0x5d0] sm:$0xff]
        %v397 = vld [vmem:[%s178 + $0x5d8] sm:$0xff]
        %v398 = vld [vmem:[%s178 + $0x5e0] sm:$0xff]
        %v399 = vld [vmem:[%s178 + $0x5e8] sm:$0xff]
        %v400 = vld [vmem:[%s178 + $0x5f0] sm:$0xff]
        %v401 = vld [vmem:[%s178 + $0x5f8] sm:$0xff]
        %v402 = vld [vmem:[%s178 + $0x600] sm:$0xff]
        %v403 = vld [vmem:[%s178 + $0x608] sm:$0xff]
        %v404 = vld [vmem:[%s178 + $0x610] sm:$0xff]
        %v405 = vld [vmem:[%s178 + $0x618] sm:$0xff]
        %v406 = vld [vmem:[%s178 + $0x620] sm:$0xff]
        %v407 = vld [vmem:[%s178 + $0x628] sm:$0xff]
        %v408 = vld [vmem:[%s178 + $0x630] sm:$0xff]
        %v409 = vld [vmem:[%s178 + $0x638] sm:$0xff]
        %v410 = vld [vmem:[%s178 + $0x640] sm:$0xff]
        %v411 = vld [vmem:[%s178 + $0x648] sm:$0xff]
        %v412 = vld [vmem:[%s178 + $0x650] sm:$0xff]
        %v413 = vld [vmem:[%s178 + $0x658] sm:$0xff]
        %v414 = vld [vmem:[%s178 + $0x660] sm:$0xff]
        %v415 = vld [vmem:[%s178 + $0x668] sm:$0xff]
        %v416 = vld [vmem:[%s178 + $0x670] sm:$0xff]
        %v417 = vld [vmem:[%s178 + $0x678] sm:$0xff]
        %v418 = vld [vmem:[%s178 + $0x680] sm:$0xff]
        %v419 = vld [vmem:[%s178 + $0x688] sm:$0xff]
        %v420 = vld [vmem:[%s178 + $0x690] sm:$0xff]
        %v421 = vld [vmem:[%s178 + $0x698] sm:$0xff]
        %v422 = vld [vmem:[%s178 + $0x6a0] sm:$0xff]
        %v423 = vld [vmem:[%s178 + $0x6a8] sm:$0xff]
        %v424 = vld [vmem:[%s178 + $0x6b0] sm:$0xff]
        %v425 = vld [vmem:[%s178 + $0x6b8] sm:$0xff]
        %v426 = vld [vmem:[%s178 + $0x6c0] sm:$0xff]
        %v427 = vld [vmem:[%s178 + $0x6c8] sm:$0xff]
        %v428 = vld [vmem:[%s178 + $0x6d0] sm:$0xff]
        %v429 = vld [vmem:[%s178 + $0x6d8] sm:$0xff]
        %v430 = vld [vmem:[%s178 + $0x6e0] sm:$0xff]
        %v431 = vld [vmem:[%s178 + $0x6e8] sm:$0xff]
        %v432 = vld [vmem:[%s178 + $0x6f0] sm:$0xff]
        %v433 = vld [vmem:[%s178 + $0x6f8] sm:$0xff]
        %v434 = vld [vmem:[%s178 + $0x700] sm:$0xff]
        %v435 = vld [vmem:[%s178 + $0x708] sm:$0xff]
        %v436 = vld [vmem:[%s178 + $0x710] sm:$0xff]
        %v437 = vld [vmem:[%s178 + $0x718] sm:$0xff]
        %v438 = vld [vmem:[%s178 + $0x720] sm:$0xff]
        %v439 = vld [vmem:[%s178 + $0x728] sm:$0xff]
        %v440 = vld [vmem:[%s178 + $0x730] sm:$0xff]
        %v441 = vld [vmem:[%s178 + $0x738] sm:$0xff]
        %v442 = vld [vmem:[%s178 + $0x740] sm:$0xff]
        %v443 = vld [vmem:[%s178 + $0x748] sm:$0xff]
        %v444 = vld [vmem:[%s178 + $0x750] sm:$0xff]
        %v445 = vld [vmem:[%s178 + $0x758] sm:$0xff]
        %v446 = vld [vmem:[%s178 + $0x760] sm:$0xff]
        %v447 = vld [vmem:[%s178 + $0x768] sm:$0xff]
        %v448 = vld [vmem:[%s178 + $0x770] sm:$0xff]
        %v449 = vld [vmem:[%s178 + $0x778] sm:$0xff]
        %v450 = vld [vmem:[%s178 + $0x780] sm:$0xff]
        %v451 = vld [vmem:[%s178 + $0x788] sm:$0xff]
        %v452 = vld [vmem:[%s178 + $0x790] sm:$0xff]
        %v453 = vld [vmem:[%s178 + $0x798] sm:$0xff]
        %v454 = vld [vmem:[%s178 + $0x7a0] sm:$0xff]
        %v455 = vld [vmem:[%s178 + $0x7a8] sm:$0xff]
        %v456 = vld [vmem:[%s178 + $0x7b0] sm:$0xff]
        %v457 = vld [vmem:[%s178 + $0x7b8] sm:$0xff]
        %v458 = vld [vmem:[%s178 + $0x7c0] sm:$0xff]
        %v459 = vld [vmem:[%s178 + $0x7c8] sm:$0xff]
        %v460 = vld [vmem:[%s178 + $0x7d0] sm:$0xff]
        %v461 = vld [vmem:[%s178 + $0x7d8] sm:$0xff]
        %v462 = vld [vmem:[%s178 + $0x7e0] sm:$0xff]
        %v463 = vld [vmem:[%s178 + $0x7e8] sm:$0xff]
        %v464 = vld [vmem:[%s178 + $0x7f0] sm:$0xff]
        %v465 = vld [vmem:[%s178 + $0x7f8] sm:$0xff]
        %v466 = vld [vmem:[#allocation5] sm:$0xf]
        %v468 = vperm.slane %v466, 0
        %v469 = vperm.slane %v466, 1
        %v470 = vperm.slane %v466, 2
        %v471 = vperm.slane %v466, 3
        %v476 = vadd.f32 %v210, %v468
        %v477 = vadd.f32 %v211, %v469
        %v478 = vadd.f32 %v212, %v470
        %v479 = vadd.f32 %v213, %v471
        %v480 = vadd.f32 %v214, %v468
        %v481 = vadd.f32 %v215, %v469
        %v482 = vadd.f32 %v216, %v470
        %v483 = vadd.f32 %v217, %v471
        %v484 = vadd.f32 %v218, %v468
        %v485 = vadd.f32 %v219, %v469
        %v486 = vadd.f32 %v220, %v470
        %v487 = vadd.f32 %v221, %v471
        %v488 = vadd.f32 %v222, %v468
        %v489 = vadd.f32 %v223, %v469
        %v490 = vadd.f32 %v224, %v470
        %v491 = vadd.f32 %v225, %v471
        %v492 = vadd.f32 %v226, %v468
        %v493 = vadd.f32 %v227, %v469
        %v494 = vadd.f32 %v228, %v470
        %v495 = vadd.f32 %v229, %v471
        %v496 = vadd.f32 %v230, %v468
        %v497 = vadd.f32 %v231, %v469
        %v498 = vadd.f32 %v232, %v470
        %v499 = vadd.f32 %v233, %v471
        %v500 = vadd.f32 %v234, %v468
        %v501 = vadd.f32 %v235, %v469
        %v502 = vadd.f32 %v236, %v470
        %v503 = vadd.f32 %v237, %v471
        %v504 = vadd.f32 %v238, %v468
        %v505 = vadd.f32 %v239, %v469
        %v506 = vadd.f32 %v240, %v470
        %v507 = vadd.f32 %v241, %v471
        %v508 = vadd.f32 %v242, %v468
        %v509 = vadd.f32 %v243, %v469
        %v510 = vadd.f32 %v244, %v470
        %v511 = vadd.f32 %v245, %v471
        %v512 = vadd.f32 %v246, %v468
        %v513 = vadd.f32 %v247, %v469
        %v514 = vadd.f32 %v248, %v470
        %v515 = vadd.f32 %v249, %v471
        %v516 = vadd.f32 %v250, %v468
        %v517 = vadd.f32 %v251, %v469
        %v518 = vadd.f32 %v252, %v470
        %v519 = vadd.f32 %v253, %v471
        %v520 = vadd.f32 %v254, %v468
        %v521 = vadd.f32 %v255, %v469
        %v522 = vadd.f32 %v256, %v470
        %v523 = vadd.f32 %v257, %v471
        %v524 = vadd.f32 %v258, %v468
        %v525 = vadd.f32 %v259, %v469
        %v526 = vadd.f32 %v260, %v470
        %v527 = vadd.f32 %v261, %v471
        %v528 = vadd.f32 %v262, %v468
        %v529 = vadd.f32 %v263, %v469
        %v530 = vadd.f32 %v264, %v470
        %v531 = vadd.f32 %v265, %v471
        %v532 = vadd.f32 %v266, %v468
        %v533 = vadd.f32 %v267, %v469
        %v534 = vadd.f32 %v268, %v470
        %v535 = vadd.f32 %v269, %v471
        %v536 = vadd.f32 %v270, %v468
        %v537 = vadd.f32 %v271, %v469
        %v538 = vadd.f32 %v272, %v470
        %v539 = vadd.f32 %v273, %v471
        %v540 = vadd.f32 %v274, %v468
        %v541 = vadd.f32 %v275, %v469
        %v542 = vadd.f32 %v276, %v470
        %v543 = vadd.f32 %v277, %v471
        %v544 = vadd.f32 %v278, %v468
        %v545 = vadd.f32 %v279, %v469
        %v546 = vadd.f32 %v280, %v470
        %v547 = vadd.f32 %v281, %v471
        %v548 = vadd.f32 %v282, %v468
        %v549 = vadd.f32 %v283, %v469
        %v550 = vadd.f32 %v284, %v470
        %v551 = vadd.f32 %v285, %v471
        %v552 = vadd.f32 %v286, %v468
        %v553 = vadd.f32 %v287, %v469
        %v554 = vadd.f32 %v288, %v470
        %v555 = vadd.f32 %v289, %v471
        %v556 = vadd.f32 %v290, %v468
        %v557 = vadd.f32 %v291, %v469
        %v558 = vadd.f32 %v292, %v470
        %v559 = vadd.f32 %v293, %v471
        %v560 = vadd.f32 %v294, %v468
        %v561 = vadd.f32 %v295, %v469
        %v562 = vadd.f32 %v296, %v470
        %v563 = vadd.f32 %v297, %v471
        %v564 = vadd.f32 %v298, %v468
        %v565 = vadd.f32 %v299, %v469
        %v566 = vadd.f32 %v300, %v470
        %v567 = vadd.f32 %v301, %v471
        %v568 = vadd.f32 %v302, %v468
        %v569 = vadd.f32 %v303, %v469
        %v570 = vadd.f32 %v304, %v470
        %v571 = vadd.f32 %v305, %v471
        %v572 = vadd.f32 %v306, %v468
        %v573 = vadd.f32 %v307, %v469
        %v574 = vadd.f32 %v308, %v470
        %v575 = vadd.f32 %v309, %v471
        %v576 = vadd.f32 %v310, %v468
        %v577 = vadd.f32 %v311, %v469
        %v578 = vadd.f32 %v312, %v470
        %v579 = vadd.f32 %v313, %v471
        %v580 = vadd.f32 %v314, %v468
        %v581 = vadd.f32 %v315, %v469
        %v582 = vadd.f32 %v316, %v470
        %v583 = vadd.f32 %v317, %v471
        %v584 = vadd.f32 %v318, %v468
        %v585 = vadd.f32 %v319, %v469
        %v586 = vadd.f32 %v320, %v470
        %v587 = vadd.f32 %v321, %v471
        %v588 = vadd.f32 %v322, %v468
        %v589 = vadd.f32 %v323, %v469
        %v590 = vadd.f32 %v324, %v470
        %v591 = vadd.f32 %v325, %v471
        %v592 = vadd.f32 %v326, %v468
        %v593 = vadd.f32 %v327, %v469
        %v594 = vadd.f32 %v328, %v470
        %v595 = vadd.f32 %v329, %v471
        %v596 = vadd.f32 %v330, %v468
        %v597 = vadd.f32 %v331, %v469
        %v598 = vadd.f32 %v332, %v470
        %v599 = vadd.f32 %v333, %v471
        %v600 = vadd.f32 %v334, %v468
        %v601 = vadd.f32 %v335, %v469
        %v602 = vadd.f32 %v336, %v470
        %v603 = vadd.f32 %v337, %v471
        %v604 = vadd.f32 %v338, %v468
        %v605 = vadd.f32 %v339, %v469
        %v606 = vadd.f32 %v340, %v470
        %v607 = vadd.f32 %v341, %v471
        %v608 = vadd.f32 %v342, %v468
        %v609 = vadd.f32 %v343, %v469
        %v610 = vadd.f32 %v344, %v470
        %v611 = vadd.f32 %v345, %v471
        %v612 = vadd.f32 %v346, %v468
        %v613 = vadd.f32 %v347, %v469
        %v614 = vadd.f32 %v348, %v470
        %v615 = vadd.f32 %v349, %v471
        %v616 = vadd.f32 %v350, %v468
        %v617 = vadd.f32 %v351, %v469
        %v618 = vadd.f32 %v352, %v470
        %v619 = vadd.f32 %v353, %v471
        %v620 = vadd.f32 %v354, %v468
        %v621 = vadd.f32 %v355, %v469
        %v622 = vadd.f32 %v356, %v470
        %v623 = vadd.f32 %v357, %v471
        %v624 = vadd.f32 %v358, %v468
        %v625 = vadd.f32 %v359, %v469
        %v626 = vadd.f32 %v360, %v470
        %v627 = vadd.f32 %v361, %v471
        %v628 = vadd.f32 %v362, %v468
        %v629 = vadd.f32 %v363, %v469
        %v630 = vadd.f32 %v364, %v470
        %v631 = vadd.f32 %v365, %v471
        %v632 = vadd.f32 %v366, %v468
        %v633 = vadd.f32 %v367, %v469
        %v634 = vadd.f32 %v368, %v470
        %v635 = vadd.f32 %v369, %v471
        %v636 = vadd.f32 %v370, %v468
        %v637 = vadd.f32 %v371, %v469
        %v638 = vadd.f32 %v372, %v470
        %v639 = vadd.f32 %v373, %v471
        %v640 = vadd.f32 %v374, %v468
        %v641 = vadd.f32 %v375, %v469
        %v642 = vadd.f32 %v376, %v470
        %v643 = vadd.f32 %v377, %v471
        %v644 = vadd.f32 %v378, %v468
        %v645 = vadd.f32 %v379, %v469
        %v646 = vadd.f32 %v380, %v470
        %v647 = vadd.f32 %v381, %v471
        %v648 = vadd.f32 %v382, %v468
        %v649 = vadd.f32 %v383, %v469
        %v650 = vadd.f32 %v384, %v470
        %v651 = vadd.f32 %v385, %v471
        %v652 = vadd.f32 %v386, %v468
        %v653 = vadd.f32 %v387, %v469
        %v654 = vadd.f32 %v388, %v470
        %v655 = vadd.f32 %v389, %v471
        %v656 = vadd.f32 %v390, %v468
        %v657 = vadd.f32 %v391, %v469
        %v658 = vadd.f32 %v392, %v470
        %v659 = vadd.f32 %v393, %v471
        %v660 = vadd.f32 %v394, %v468
        %v661 = vadd.f32 %v395, %v469
        %v662 = vadd.f32 %v396, %v470
        %v663 = vadd.f32 %v397, %v471
        %v664 = vadd.f32 %v398, %v468
        %v665 = vadd.f32 %v399, %v469
        %v666 = vadd.f32 %v400, %v470
        %v667 = vadd.f32 %v401, %v471
        %v668 = vadd.f32 %v402, %v468
        %v669 = vadd.f32 %v403, %v469
        %v670 = vadd.f32 %v404, %v470
        %v671 = vadd.f32 %v405, %v471
        %v672 = vadd.f32 %v406, %v468
        %v673 = vadd.f32 %v407, %v469
        %v674 = vadd.f32 %v408, %v470
        %v675 = vadd.f32 %v409, %v471
        %v676 = vadd.f32 %v410, %v468
        %v677 = vadd.f32 %v411, %v469
        %v678 = vadd.f32 %v412, %v470
        %v679 = vadd.f32 %v413, %v471
        %v680 = vadd.f32 %v414, %v468
        %v681 = vadd.f32 %v415, %v469
        %v682 = vadd.f32 %v416, %v470
        %v683 = vadd.f32 %v417, %v471
        %v684 = vadd.f32 %v418, %v468
        %v685 = vadd.f32 %v419, %v469
        %v686 = vadd.f32 %v420, %v470
        %v687 = vadd.f32 %v421, %v471
        %v688 = vadd.f32 %v422, %v468
        %v689 = vadd.f32 %v423, %v469
        %v690 = vadd.f32 %v424, %v470
        %v691 = vadd.f32 %v425, %v471
        %v692 = vadd.f32 %v426, %v468
        %v693 = vadd.f32 %v427, %v469
        %v694 = vadd.f32 %v428, %v470
        %v695 = vadd.f32 %v429, %v471
        %v696 = vadd.f32 %v430, %v468
        %v697 = vadd.f32 %v431, %v469
        %v698 = vadd.f32 %v432, %v470
        %v699 = vadd.f32 %v433, %v471
        %v700 = vadd.f32 %v434, %v468
        %v701 = vadd.f32 %v435, %v469
        %v702 = vadd.f32 %v436, %v470
        %v703 = vadd.f32 %v437, %v471
        %v704 = vadd.f32 %v438, %v468
        %v705 = vadd.f32 %v439, %v469
        %v706 = vadd.f32 %v440, %v470
        %v707 = vadd.f32 %v441, %v471
        %v708 = vadd.f32 %v442, %v468
        %v709 = vadd.f32 %v443, %v469
        %v710 = vadd.f32 %v444, %v470
        %v711 = vadd.f32 %v445, %v471
        %v712 = vadd.f32 %v446, %v468
        %v713 = vadd.f32 %v447, %v469
        %v714 = vadd.f32 %v448, %v470
        %v715 = vadd.f32 %v449, %v471
        %v716 = vadd.f32 %v450, %v468
        %v717 = vadd.f32 %v451, %v469
        %v718 = vadd.f32 %v452, %v470
        %v719 = vadd.f32 %v453, %v471
        %v720 = vadd.f32 %v454, %v468
        %v721 = vadd.f32 %v455, %v469
        %v722 = vadd.f32 %v456, %v470
        %v723 = vadd.f32 %v457, %v471
        %v724 = vadd.f32 %v458, %v468
        %v725 = vadd.f32 %v459, %v469
        %v726 = vadd.f32 %v460, %v470
        %v727 = vadd.f32 %v461, %v471
        %v728 = vadd.f32 %v462, %v468
        %v729 = vadd.f32 %v463, %v469
        %v730 = vadd.f32 %v464, %v470
        %v731 = vadd.f32 %v465, %v471
        %732 = vst [vmem:[%s204] sm:$0xff] %v476
        %733 = vst [vmem:[%s204 + $0x8] sm:$0xff] %v477
        %734 = vst [vmem:[%s204 + $0x10] sm:$0xff] %v478
        %735 = vst [vmem:[%s204 + $0x18] sm:$0xff] %v479
        %736 = vst [vmem:[%s204 + $0x20] sm:$0xff] %v480
        %737 = vst [vmem:[%s204 + $0x28] sm:$0xff] %v481
        %738 = vst [vmem:[%s204 + $0x30] sm:$0xff] %v482
        %739 = vst [vmem:[%s204 + $0x38] sm:$0xff] %v483
        %740 = vst [vmem:[%s204 + $0x40] sm:$0xff] %v484
        %741 = vst [vmem:[%s204 + $0x48] sm:$0xff] %v485
        %742 = vst [vmem:[%s204 + $0x50] sm:$0xff] %v486
        %743 = vst [vmem:[%s204 + $0x58] sm:$0xff] %v487
        %744 = vst [vmem:[%s204 + $0x60] sm:$0xff] %v488
        %745 = vst [vmem:[%s204 + $0x68] sm:$0xff] %v489
        %746 = vst [vmem:[%s204 + $0x70] sm:$0xff] %v490
        %747 = vst [vmem:[%s204 + $0x78] sm:$0xff] %v491
        %748 = vst [vmem:[%s204 + $0x80] sm:$0xff] %v492
        %749 = vst [vmem:[%s204 + $0x88] sm:$0xff] %v493
        %750 = vst [vmem:[%s204 + $0x90] sm:$0xff] %v494
        %751 = vst [vmem:[%s204 + $0x98] sm:$0xff] %v495
        %752 = vst [vmem:[%s204 + $0xa0] sm:$0xff] %v496
        %753 = vst [vmem:[%s204 + $0xa8] sm:$0xff] %v497
        %754 = vst [vmem:[%s204 + $0xb0] sm:$0xff] %v498
        %755 = vst [vmem:[%s204 + $0xb8] sm:$0xff] %v499
        %756 = vst [vmem:[%s204 + $0xc0] sm:$0xff] %v500
        %757 = vst [vmem:[%s204 + $0xc8] sm:$0xff] %v501
        %758 = vst [vmem:[%s204 + $0xd0] sm:$0xff] %v502
        %759 = vst [vmem:[%s204 + $0xd8] sm:$0xff] %v503
        %760 = vst [vmem:[%s204 + $0xe0] sm:$0xff] %v504
        %761 = vst [vmem:[%s204 + $0xe8] sm:$0xff] %v505
        %762 = vst [vmem:[%s204 + $0xf0] sm:$0xff] %v506
        %763 = vst [vmem:[%s204 + $0xf8] sm:$0xff] %v507
        %764 = vst [vmem:[%s204 + $0x100] sm:$0xff] %v508
        %765 = vst [vmem:[%s204 + $0x108] sm:$0xff] %v509
        %766 = vst [vmem:[%s204 + $0x110] sm:$0xff] %v510
        %767 = vst [vmem:[%s204 + $0x118] sm:$0xff] %v511
        %768 = vst [vmem:[%s204 + $0x120] sm:$0xff] %v512
        %769 = vst [vmem:[%s204 + $0x128] sm:$0xff] %v513
        %770 = vst [vmem:[%s204 + $0x130] sm:$0xff] %v514
        %771 = vst [vmem:[%s204 + $0x138] sm:$0xff] %v515
        %772 = vst [vmem:[%s204 + $0x140] sm:$0xff] %v516
        %773 = vst [vmem:[%s204 + $0x148] sm:$0xff] %v517
        %774 = vst [vmem:[%s204 + $0x150] sm:$0xff] %v518
        %775 = vst [vmem:[%s204 + $0x158] sm:$0xff] %v519
        %776 = vst [vmem:[%s204 + $0x160] sm:$0xff] %v520
        %777 = vst [vmem:[%s204 + $0x168] sm:$0xff] %v521
        %778 = vst [vmem:[%s204 + $0x170] sm:$0xff] %v522
        %779 = vst [vmem:[%s204 + $0x178] sm:$0xff] %v523
        %780 = vst [vmem:[%s204 + $0x180] sm:$0xff] %v524
        %781 = vst [vmem:[%s204 + $0x188] sm:$0xff] %v525
        %782 = vst [vmem:[%s204 + $0x190] sm:$0xff] %v526
        %783 = vst [vmem:[%s204 + $0x198] sm:$0xff] %v527
        %784 = vst [vmem:[%s204 + $0x1a0] sm:$0xff] %v528
        %785 = vst [vmem:[%s204 + $0x1a8] sm:$0xff] %v529
        %786 = vst [vmem:[%s204 + $0x1b0] sm:$0xff] %v530
        %787 = vst [vmem:[%s204 + $0x1b8] sm:$0xff] %v531
        %788 = vst [vmem:[%s204 + $0x1c0] sm:$0xff] %v532
        %789 = vst [vmem:[%s204 + $0x1c8] sm:$0xff] %v533
        %790 = vst [vmem:[%s204 + $0x1d0] sm:$0xff] %v534
        %791 = vst [vmem:[%s204 + $0x1d8] sm:$0xff] %v535
        %792 = vst [vmem:[%s204 + $0x1e0] sm:$0xff] %v536
        %793 = vst [vmem:[%s204 + $0x1e8] sm:$0xff] %v537
        %794 = vst [vmem:[%s204 + $0x1f0] sm:$0xff] %v538
        %795 = vst [vmem:[%s204 + $0x1f8] sm:$0xff] %v539
        %796 = vst [vmem:[%s204 + $0x200] sm:$0xff] %v540
        %797 = vst [vmem:[%s204 + $0x208] sm:$0xff] %v541
        %798 = vst [vmem:[%s204 + $0x210] sm:$0xff] %v542
        %799 = vst [vmem:[%s204 + $0x218] sm:$0xff] %v543
        %800 = vst [vmem:[%s204 + $0x220] sm:$0xff] %v544
        %801 = vst [vmem:[%s204 + $0x228] sm:$0xff] %v545
        %802 = vst [vmem:[%s204 + $0x230] sm:$0xff] %v546
        %803 = vst [vmem:[%s204 + $0x238] sm:$0xff] %v547
        %804 = vst [vmem:[%s204 + $0x240] sm:$0xff] %v548
        %805 = vst [vmem:[%s204 + $0x248] sm:$0xff] %v549
        %806 = vst [vmem:[%s204 + $0x250] sm:$0xff] %v550
        %807 = vst [vmem:[%s204 + $0x258] sm:$0xff] %v551
        %808 = vst [vmem:[%s204 + $0x260] sm:$0xff] %v552
        %809 = vst [vmem:[%s204 + $0x268] sm:$0xff] %v553
        %810 = vst [vmem:[%s204 + $0x270] sm:$0xff] %v554
        %811 = vst [vmem:[%s204 + $0x278] sm:$0xff] %v555
        %812 = vst [vmem:[%s204 + $0x280] sm:$0xff] %v556
        %813 = vst [vmem:[%s204 + $0x288] sm:$0xff] %v557
        %814 = vst [vmem:[%s204 + $0x290] sm:$0xff] %v558
        %815 = vst [vmem:[%s204 + $0x298] sm:$0xff] %v559
        %816 = vst [vmem:[%s204 + $0x2a0] sm:$0xff] %v560
        %817 = vst [vmem:[%s204 + $0x2a8] sm:$0xff] %v561
        %818 = vst [vmem:[%s204 + $0x2b0] sm:$0xff] %v562
        %819 = vst [vmem:[%s204 + $0x2b8] sm:$0xff] %v563
        %820 = vst [vmem:[%s204 + $0x2c0] sm:$0xff] %v564
        %821 = vst [vmem:[%s204 + $0x2c8] sm:$0xff] %v565
        %822 = vst [vmem:[%s204 + $0x2d0] sm:$0xff] %v566
        %823 = vst [vmem:[%s204 + $0x2d8] sm:$0xff] %v567
        %824 = vst [vmem:[%s204 + $0x2e0] sm:$0xff] %v568
        %825 = vst [vmem:[%s204 + $0x2e8] sm:$0xff] %v569
        %826 = vst [vmem:[%s204 + $0x2f0] sm:$0xff] %v570
        %827 = vst [vmem:[%s204 + $0x2f8] sm:$0xff] %v571
        %828 = vst [vmem:[%s204 + $0x300] sm:$0xff] %v572
        %829 = vst [vmem:[%s204 + $0x308] sm:$0xff] %v573
        %830 = vst [vmem:[%s204 + $0x310] sm:$0xff] %v574
        %831 = vst [vmem:[%s204 + $0x318] sm:$0xff] %v575
        %832 = vst [vmem:[%s204 + $0x320] sm:$0xff] %v576
        %833 = vst [vmem:[%s204 + $0x328] sm:$0xff] %v577
        %834 = vst [vmem:[%s204 + $0x330] sm:$0xff] %v578
        %835 = vst [vmem:[%s204 + $0x338] sm:$0xff] %v579
        %836 = vst [vmem:[%s204 + $0x340] sm:$0xff] %v580
        %837 = vst [vmem:[%s204 + $0x348] sm:$0xff] %v581
        %838 = vst [vmem:[%s204 + $0x350] sm:$0xff] %v582
        %839 = vst [vmem:[%s204 + $0x358] sm:$0xff] %v583
        %840 = vst [vmem:[%s204 + $0x360] sm:$0xff] %v584
        %841 = vst [vmem:[%s204 + $0x368] sm:$0xff] %v585
        %842 = vst [vmem:[%s204 + $0x370] sm:$0xff] %v586
        %843 = vst [vmem:[%s204 + $0x378] sm:$0xff] %v587
        %844 = vst [vmem:[%s204 + $0x380] sm:$0xff] %v588
        %845 = vst [vmem:[%s204 + $0x388] sm:$0xff] %v589
        %846 = vst [vmem:[%s204 + $0x390] sm:$0xff] %v590
        %847 = vst [vmem:[%s204 + $0x398] sm:$0xff] %v591
        %848 = vst [vmem:[%s204 + $0x3a0] sm:$0xff] %v592
        %849 = vst [vmem:[%s204 + $0x3a8] sm:$0xff] %v593
        %850 = vst [vmem:[%s204 + $0x3b0] sm:$0xff] %v594
        %851 = vst [vmem:[%s204 + $0x3b8] sm:$0xff] %v595
        %852 = vst [vmem:[%s204 + $0x3c0] sm:$0xff] %v596
        %853 = vst [vmem:[%s204 + $0x3c8] sm:$0xff] %v597
        %854 = vst [vmem:[%s204 + $0x3d0] sm:$0xff] %v598
        %855 = vst [vmem:[%s204 + $0x3d8] sm:$0xff] %v599
        %856 = vst [vmem:[%s204 + $0x3e0] sm:$0xff] %v600
        %857 = vst [vmem:[%s204 + $0x3e8] sm:$0xff] %v601
        %858 = vst [vmem:[%s204 + $0x3f0] sm:$0xff] %v602
        %859 = vst [vmem:[%s204 + $0x3f8] sm:$0xff] %v603
        %860 = vst [vmem:[%s204 + $0x400] sm:$0xff] %v604
        %861 = vst [vmem:[%s204 + $0x408] sm:$0xff] %v605
        %862 = vst [vmem:[%s204 + $0x410] sm:$0xff] %v606
        %863 = vst [vmem:[%s204 + $0x418] sm:$0xff] %v607
        %864 = vst [vmem:[%s204 + $0x420] sm:$0xff] %v608
        %865 = vst [vmem:[%s204 + $0x428] sm:$0xff] %v609
        %866 = vst [vmem:[%s204 + $0x430] sm:$0xff] %v610
        %867 = vst [vmem:[%s204 + $0x438] sm:$0xff] %v611
        %868 = vst [vmem:[%s204 + $0x440] sm:$0xff] %v612
        %869 = vst [vmem:[%s204 + $0x448] sm:$0xff] %v613
        %870 = vst [vmem:[%s204 + $0x450] sm:$0xff] %v614
        %871 = vst [vmem:[%s204 + $0x458] sm:$0xff] %v615
        %872 = vst [vmem:[%s204 + $0x460] sm:$0xff] %v616
        %873 = vst [vmem:[%s204 + $0x468] sm:$0xff] %v617
        %874 = vst [vmem:[%s204 + $0x470] sm:$0xff] %v618
        %875 = vst [vmem:[%s204 + $0x478] sm:$0xff] %v619
        %876 = vst [vmem:[%s204 + $0x480] sm:$0xff] %v620
        %877 = vst [vmem:[%s204 + $0x488] sm:$0xff] %v621
        %878 = vst [vmem:[%s204 + $0x490] sm:$0xff] %v622
        %879 = vst [vmem:[%s204 + $0x498] sm:$0xff] %v623
        %880 = vst [vmem:[%s204 + $0x4a0] sm:$0xff] %v624
        %881 = vst [vmem:[%s204 + $0x4a8] sm:$0xff] %v625
        %882 = vst [vmem:[%s204 + $0x4b0] sm:$0xff] %v626
        %883 = vst [vmem:[%s204 + $0x4b8] sm:$0xff] %v627
        %884 = vst [vmem:[%s204 + $0x4c0] sm:$0xff] %v628
        %885 = vst [vmem:[%s204 + $0x4c8] sm:$0xff] %v629
        %886 = vst [vmem:[%s204 + $0x4d0] sm:$0xff] %v630
        %887 = vst [vmem:[%s204 + $0x4d8] sm:$0xff] %v631
        %888 = vst [vmem:[%s204 + $0x4e0] sm:$0xff] %v632
        %889 = vst [vmem:[%s204 + $0x4e8] sm:$0xff] %v633
        %890 = vst [vmem:[%s204 + $0x4f0] sm:$0xff] %v634
        %891 = vst [vmem:[%s204 + $0x4f8] sm:$0xff] %v635
        %892 = vst [vmem:[%s204 + $0x500] sm:$0xff] %v636
        %893 = vst [vmem:[%s204 + $0x508] sm:$0xff] %v637
        %894 = vst [vmem:[%s204 + $0x510] sm:$0xff] %v638
        %895 = vst [vmem:[%s204 + $0x518] sm:$0xff] %v639
        %896 = vst [vmem:[%s204 + $0x520] sm:$0xff] %v640
        %897 = vst [vmem:[%s204 + $0x528] sm:$0xff] %v641
        %898 = vst [vmem:[%s204 + $0x530] sm:$0xff] %v642
        %899 = vst [vmem:[%s204 + $0x538] sm:$0xff] %v643
        %900 = vst [vmem:[%s204 + $0x540] sm:$0xff] %v644
        %901 = vst [vmem:[%s204 + $0x548] sm:$0xff] %v645
        %902 = vst [vmem:[%s204 + $0x550] sm:$0xff] %v646
        %903 = vst [vmem:[%s204 + $0x558] sm:$0xff] %v647
        %904 = vst [vmem:[%s204 + $0x560] sm:$0xff] %v648
        %905 = vst [vmem:[%s204 + $0x568] sm:$0xff] %v649
        %906 = vst [vmem:[%s204 + $0x570] sm:$0xff] %v650
        %907 = vst [vmem:[%s204 + $0x578] sm:$0xff] %v651
        %908 = vst [vmem:[%s204 + $0x580] sm:$0xff] %v652
        %909 = vst [vmem:[%s204 + $0x588] sm:$0xff] %v653
        %910 = vst [vmem:[%s204 + $0x590] sm:$0xff] %v654
        %911 = vst [vmem:[%s204 + $0x598] sm:$0xff] %v655
        %912 = vst [vmem:[%s204 + $0x5a0] sm:$0xff] %v656
        %913 = vst [vmem:[%s204 + $0x5a8] sm:$0xff] %v657
        %914 = vst [vmem:[%s204 + $0x5b0] sm:$0xff] %v658
        %915 = vst [vmem:[%s204 + $0x5b8] sm:$0xff] %v659
        %916 = vst [vmem:[%s204 + $0x5c0] sm:$0xff] %v660
        %917 = vst [vmem:[%s204 + $0x5c8] sm:$0xff] %v661
        %918 = vst [vmem:[%s204 + $0x5d0] sm:$0xff] %v662
        %919 = vst [vmem:[%s204 + $0x5d8] sm:$0xff] %v663
        %920 = vst [vmem:[%s204 + $0x5e0] sm:$0xff] %v664
        %921 = vst [vmem:[%s204 + $0x5e8] sm:$0xff] %v665
        %922 = vst [vmem:[%s204 + $0x5f0] sm:$0xff] %v666
        %923 = vst [vmem:[%s204 + $0x5f8] sm:$0xff] %v667
        %924 = vst [vmem:[%s204 + $0x600] sm:$0xff] %v668
        %925 = vst [vmem:[%s204 + $0x608] sm:$0xff] %v669
        %926 = vst [vmem:[%s204 + $0x610] sm:$0xff] %v670
        %927 = vst [vmem:[%s204 + $0x618] sm:$0xff] %v671
        %928 = vst [vmem:[%s204 + $0x620] sm:$0xff] %v672
        %929 = vst [vmem:[%s204 + $0x628] sm:$0xff] %v673
        %930 = vst [vmem:[%s204 + $0x630] sm:$0xff] %v674
        %931 = vst [vmem:[%s204 + $0x638] sm:$0xff] %v675
        %932 = vst [vmem:[%s204 + $0x640] sm:$0xff] %v676
        %933 = vst [vmem:[%s204 + $0x648] sm:$0xff] %v677
        %934 = vst [vmem:[%s204 + $0x650] sm:$0xff] %v678
        %935 = vst [vmem:[%s204 + $0x658] sm:$0xff] %v679
        %936 = vst [vmem:[%s204 + $0x660] sm:$0xff] %v680
        %937 = vst [vmem:[%s204 + $0x668] sm:$0xff] %v681
        %938 = vst [vmem:[%s204 + $0x670] sm:$0xff] %v682
        %939 = vst [vmem:[%s204 + $0x678] sm:$0xff] %v683
        %940 = vst [vmem:[%s204 + $0x680] sm:$0xff] %v684
        %941 = vst [vmem:[%s204 + $0x688] sm:$0xff] %v685
        %942 = vst [vmem:[%s204 + $0x690] sm:$0xff] %v686
        %943 = vst [vmem:[%s204 + $0x698] sm:$0xff] %v687
        %944 = vst [vmem:[%s204 + $0x6a0] sm:$0xff] %v688
        %945 = vst [vmem:[%s204 + $0x6a8] sm:$0xff] %v689
        %946 = vst [vmem:[%s204 + $0x6b0] sm:$0xff] %v690
        %947 = vst [vmem:[%s204 + $0x6b8] sm:$0xff] %v691
        %948 = vst [vmem:[%s204 + $0x6c0] sm:$0xff] %v692
        %949 = vst [vmem:[%s204 + $0x6c8] sm:$0xff] %v693
        %950 = vst [vmem:[%s204 + $0x6d0] sm:$0xff] %v694
        %951 = vst [vmem:[%s204 + $0x6d8] sm:$0xff] %v695
        %952 = vst [vmem:[%s204 + $0x6e0] sm:$0xff] %v696
        %953 = vst [vmem:[%s204 + $0x6e8] sm:$0xff] %v697
        %954 = vst [vmem:[%s204 + $0x6f0] sm:$0xff] %v698
        %955 = vst [vmem:[%s204 + $0x6f8] sm:$0xff] %v699
        %956 = vst [vmem:[%s204 + $0x700] sm:$0xff] %v700
        %957 = vst [vmem:[%s204 + $0x708] sm:$0xff] %v701
        %958 = vst [vmem:[%s204 + $0x710] sm:$0xff] %v702
        %959 = vst [vmem:[%s204 + $0x718] sm:$0xff] %v703
        %960 = vst [vmem:[%s204 + $0x720] sm:$0xff] %v704
        %961 = vst [vmem:[%s204 + $0x728] sm:$0xff] %v705
        %962 = vst [vmem:[%s204 + $0x730] sm:$0xff] %v706
        %963 = vst [vmem:[%s204 + $0x738] sm:$0xff] %v707
        %964 = vst [vmem:[%s204 + $0x740] sm:$0xff] %v708
        %965 = vst [vmem:[%s204 + $0x748] sm:$0xff] %v709
        %966 = vst [vmem:[%s204 + $0x750] sm:$0xff] %v710
        %967 = vst [vmem:[%s204 + $0x758] sm:$0xff] %v711
        %968 = vst [vmem:[%s204 + $0x760] sm:$0xff] %v712
        %969 = vst [vmem:[%s204 + $0x768] sm:$0xff] %v713
        %970 = vst [vmem:[%s204 + $0x770] sm:$0xff] %v714
        %971 = vst [vmem:[%s204 + $0x778] sm:$0xff] %v715
        %972 = vst [vmem:[%s204 + $0x780] sm:$0xff] %v716
        %973 = vst [vmem:[%s204 + $0x788] sm:$0xff] %v717
        %974 = vst [vmem:[%s204 + $0x790] sm:$0xff] %v718
        %975 = vst [vmem:[%s204 + $0x798] sm:$0xff] %v719
        %976 = vst [vmem:[%s204 + $0x7a0] sm:$0xff] %v720
        %977 = vst [vmem:[%s204 + $0x7a8] sm:$0xff] %v721
        %978 = vst [vmem:[%s204 + $0x7b0] sm:$0xff] %v722
        %979 = vst [vmem:[%s204 + $0x7b8] sm:$0xff] %v723
        %980 = vst [vmem:[%s204 + $0x7c0] sm:$0xff] %v724
        %981 = vst [vmem:[%s204 + $0x7c8] sm:$0xff] %v725
        %982 = vst [vmem:[%s204 + $0x7d0] sm:$0xff] %v726
        %983 = vst [vmem:[%s204 + $0x7d8] sm:$0xff] %v727
        %984 = vst [vmem:[%s204 + $0x7e0] sm:$0xff] %v728
        %985 = vst [vmem:[%s204 + $0x7e8] sm:$0xff] %v729
        %986 = vst [vmem:[%s204 + $0x7f0] sm:$0xff] %v730
        %987 = vst [vmem:[%s204 + $0x7f8] sm:$0xff] %v731
        %s988 = sand.u32 %s96, 1
        %s989 = scalar_lea.sflag [#allocation4], %s988
        %s990 = sand.u32 %s96, 1
        %s991 = smul.addr %s990, 2048
        %s992 = scalar_lea.vmem [#allocation7], %s991
        // Predicated region
        $region37: #{tpu_custom_call.1} parent=27 // pred_check
          %p993 = pneg %p106
        $region38: #{tpu_custom_call.1} parent=27 // pred_check_branch
          %995 = sbr.rel (%p993) target = $region40
        $region39: #{tpu_custom_call.1} parent=27 // pred_region
          %s996 = smul.u32 64, %s25
          %s997 = smul.u32 4, %s24
          %999 = vsyncadd %s989, 0
          %s1000 = smul.addr %s996, 4
          %s1001 = sadd.s32 %s997, %s1000
          %s1002 = smul.addr %s1001, 8
          %s1003 = scalar_lea.hbm %s2, %s1002
          %s1004 = sshll.u32 %s992, 4
          %s1005 = int_to_ptr.vmem [resolvable:$true] %s1004
          %s1006 = sshll.u32 %s1003, 4
          %s1007 = int_to_ptr.hbm [resolvable:$true] %s1006
          %1012 = dma.vmem_to_hbm [thread:$0]  %s1005, 32768, %s1007, %s989, 512, 512, 32
        $region40: #{tpu_custom_call.1} parent=27 // pred_fallthru
          _
      $region28: #{tpu_custom_call.1} parent=5 // pred_fallthru
        _
      %p1013 = scmp.le.s32.totalorder 2, %s15
      // Predicated region
      $region41: #{tpu_custom_call.1} parent=5 // pred_check
        %p1014 = pneg %p1013
      $region42: #{tpu_custom_call.1} parent=5 // pred_check_branch
        %1016 = sbr.rel (%p1014) target = $region44
      $region43: #{tpu_custom_call.1} parent=5 // pred_region
        %s1017 = ssub.s32 %s15, 2
        // Predicated region
        $region45: #{tpu_custom_call.1} parent=43 // pred_check
          %p1018 = pneg %p112
        $region46: #{tpu_custom_call.1} parent=43 // pred_check_branch
          %1020 = sbr.rel (%p1018) target = $region48
        $region47: #{tpu_custom_call.1} parent=43 // pred_region
          %s1021 = sand.u32 %s97, 1
          %s1022 = scalar_lea.sflag [#allocation4], %s1021
          %s1023 = sand.u32 %s97, 1
          %s1024 = smul.addr %s1023, 2048
          %s1025 = scalar_lea.vmem [#allocation7], %s1024
          %1027 = dma.done %s1022, 32768
        $region48: #{tpu_custom_call.1} parent=43 // pred_fallthru
          _
      $region44: #{tpu_custom_call.1} parent=5 // pred_fallthru
        _
    $region6: #{tpu_custom_call.1} parent=1 // loop_footer
      %s19 = sadd.s32 1, %s15
    $region7: #{tpu_custom_call.1} parent=1 // loop_footer_branch
      %14 = sbr.rel target = $region3
    $region8: #{tpu_custom_call.1} parent=1 // loop_exit
      _
    %1028 = vsyncpa [#allocation3], 1
    %s1029 = scalar_lea.sflag [#allocation3], 1
    %1030 = vsyncpa %s1029, 1
    %1031 = vsyncpa [#allocation6], 1
    %1032 = vsyncpa [#allocation4], 1
    %s1033 = scalar_lea.sflag [#allocation4], 1
    %1034 = vsyncpa %s1033, 1

</llo_original>
